<compile_context>
chip_gen: v7x
topology: tpu7x:2x2x1
jax: 0.10.0
libtpu: 0.0.40
codegen_flags: <defaults>
</compile_context>

<pallas_src>
import math

import jax
import jax.numpy as jnp
from jax.experimental import pallas as pl
from jax.experimental.pallas import tpu as pltpu


_LANES = 128
_SUBLANES = 8


def _round_up(x, m):
    return ((x + m - 1) // m) * m


def _tpu_vmem_bytes():
    """Physical VMEM per core; conservative fallback if the query is unavailable."""
    try:
        return int(pltpu.get_tpu_info().vmem_capacity_bytes)
    except Exception:  # best-effort hardware query only
        return 64 * 1024 * 1024


_VMEM_CAP = _tpu_vmem_bytes()
# Scoped-VMEM budget: half of physical (32 MiB on v7x, 64 MiB on v5e/v6e).
_VMEM_LIMIT = max(32 * 1024 * 1024, min(96 * 1024 * 1024, _VMEM_CAP // 2))
# Default row tile over M = N*OH*OW: larger tiles amortize the ~0.35us grid-step
# overhead on v5e/v6e (128 MiB VMEM); keep 512 where VMEM is 64 MiB (v7x).
_DEFAULT_TILE_M = 512 if _VMEM_CAP <= 64 * 1024 * 1024 else 1024


def _compiler_params():
    return pltpu.CompilerParams(dimension_semantics=("parallel",),
                                vmem_limit_bytes=_VMEM_LIMIT)


def _pick_tiling(m, want_tm):
    """Return (tile_m, padded_m) with tile_m | padded_m, sublane-aligned, and a
    1-D grid of >= 2 steps whenever the problem is big enough (v7x megacore)."""
    m_al = _round_up(max(m, 1), _SUBLANES)
    tm = min(_round_up(want_tm, _SUBLANES), m_al)
    if m_al // tm < 2 and m_al >= 2 * _SUBLANES:
        tm = _round_up(pl.cdiv(m_al, 2), _SUBLANES)
    return tm, _round_up(m, tm)


# ----------------------------- Pallas kernels ------------------------------ #

def _conv_stats_kernel(p_ref, w_ref, y_ref, stats_ref):
    """One M-tile: y = patches @ w (bf16 in, f32 acc); y stored bf16 plus a
    packed per-channel stats tile (row 0 = sum, row 1 = sum of squares)."""
    y = jnp.dot(p_ref[...], w_ref[...], preferred_element_type=jnp.float32)
    y_ref[...] = y.astype(y_ref.dtype)
    # statistics come from the f32 accumulator, NOT the bf16 store
    stats_ref[0:1, :] = jnp.sum(y, axis=0, keepdims=True)
    stats_ref[1:2, :] = jnp.sum(y * y, axis=0, keepdims=True)
    # rows 2..7 of the stats tile are never read; skipping their store removes
    # pure vst filler (single store slot on v5e).


def _bn_relu_kernel(y_ref, scale_ref, shift_ref, o_ref):
    """o = relu(y * scale + shift); y loads are bf16, math in f32 (v5e-safe)."""
    y = y_ref[...].astype(jnp.float32)
    o_ref[...] = jnp.maximum(y * scale_ref[...] + shift_ref[...], 0.0)


def _bn_relu_pool_kernel(t00_ref, t01_ref, t10_ref, t11_ref,
                         scale_ref, shift_ref, o_ref):
    """Normalize + ReLU each of the 4 pooling taps, then elementwise 2x2 max.
    scale/shift are broadcast once and reused (no per-tap re-broadcast)."""
    shape = o_ref.shape
    scale = jnp.broadcast_to(scale_ref[...], shape)
    shift = jnp.broadcast_to(shift_ref[...], shape)

    def act(t_ref):
        return jnp.maximum(t_ref[...].astype(jnp.float32) * scale + shift, 0.0)

    o_ref[...] = jnp.maximum(jnp.maximum(act(t00_ref), act(t01_ref)),
                             jnp.maximum(act(t10_ref), act(t11_ref)))


# ------------------------------ pallas wrappers ----------------------------- #

def conv_matmul_stats(patches, w_kxo, tile_m):
    """patches [Mp, Kp] bf16, w [Kp, OCp] bf16 -> y [Mp, OCp] bf16 + packed
    per-tile stats [(Mp/tile_m)*8, OCp] f32 (row 0 = sum, row 1 = sum-sq)."""
    Mp, Kp = patches.shape
    OCp = w_kxo.shape[1]
    nt = Mp // tile_m
    return pl.pallas_call(
        _conv_stats_kernel,
        out_shape=(jax.ShapeDtypeStruct((Mp, OCp), jnp.bfloat16),
                   jax.ShapeDtypeStruct((nt * _SUBLANES, OCp), jnp.float32)),
        grid=(nt,),
        in_specs=[pl.BlockSpec((tile_m, Kp), lambda i: (i, 0)),
                  pl.BlockSpec((Kp, OCp), lambda i: (0, 0))],
        out_specs=(pl.BlockSpec((tile_m, OCp), lambda i: (i, 0)),
                   pl.BlockSpec((_SUBLANES, OCp), lambda i: (i, 0))),
        compiler_params=_compiler_params(),
    )(patches, w_kxo)


def bn_relu(y, scale, shift, tile_m):
    """Elementwise normalize + ReLU over [Mp, OCp] (bf16 in, f32 out)."""
    Mp, OCp = y.shape
    nt = Mp // tile_m
    vec = pl.BlockSpec((1, OCp), lambda i: (0, 0))
    return pl.pallas_call(
        _bn_relu_kernel,
        out_shape=jax.ShapeDtypeStruct((Mp, OCp), jnp.float32),
        grid=(nt,),
        in_specs=[pl.BlockSpec((tile_m, OCp), lambda i: (i, 0)), vec, vec],
        out_specs=pl.BlockSpec((tile_m, OCp), lambda i: (i, 0)),
        compiler_params=_compiler_params(),
    )(y, scale, shift)


def bn_relu_pool(y, scale, shift, tile_m, qp):
    """y [4*qp, OCp] bf16, rows ordered tap-major -> pooled [qp, OCp] f32.

    The same y buffer is passed four times; each BlockSpec selects one tap's
    contiguous row region, so total HBM read of y is exactly one pass.
    """
    Mp, OCp = y.shape
    assert Mp == 4 * qp and qp % tile_m == 0
    nt = qp // tile_m

    def tap_spec(t):
        return pl.BlockSpec((tile_m, OCp), lambda i, t=t: (i + t * nt, 0))

    vec = pl.BlockSpec((1, OCp), lambda i: (0, 0))
    return pl.pallas_call(
        _bn_relu_pool_kernel,
        out_shape=jax.ShapeDtypeStruct((qp, OCp), jnp.float32),
        grid=(nt,),
        in_specs=[tap_spec(0), tap_spec(1), tap_spec(2), tap_spec(3), vec, vec],
        out_specs=pl.BlockSpec((tile_m, OCp), lambda i: (i, 0)),
        compiler_params=_compiler_params(),
    )(y, y, y, y, scale, shift)


# ------------------------------- XLA glue ---------------------------------- #

def _im2col(x_nchw, kernel_size, stride, padding, pool_reorder):
    """bf16 im2col patch extraction (single transpose copy).

    Returns
      [N*OH*OW, K]                  rows ordered (n, oh, ow)          if not pool_reorder
      [4, N*(OH//2)*(OW//2), K]     tap-major (a, b) x (n, oh2, ow2)  if pool_reorder
    K is ordered (c, kh, kw) to match Conv2d weight memory order.
    """
    # TODO(synk): fuse patch extraction into pass A (shifted-window BlockSpecs
    # over the padded NHWC activation, one per conv tap) once C is large enough
    # (~>=32) to feed the MXU per tap; removes the KH*KW-fold HBM inflation.
    N, C, H, W = x_nchw.shape
    KH = KW = kernel_size
    OH = (H + 2 * padding - KH) // stride + 1
    OW = (W + 2 * padding - KW) // stride + 1
    K = C * KH * KW
    xp = jnp.pad(x_nchw,
                 ((0, 0), (0, 0), (padding, padding), (padding, padding)))
    # Cast BEFORE tap extraction: the KH*KW-inflated stack/transpose copy below
    # then moves half the bytes.
    xp = xp.astype(jnp.bfloat16)
    taps = []
    for kh in range(KH):
        for kw in range(KW):
            taps.append(xp[:, :, kh:kh + stride * OH:stride,
                              kw:kw + stride * OW:stride])       # [N, C, OH, OW]
    t = jnp.stack(taps, axis=2)                                  # [N, C, KK, OH, OW]
    if pool_reorder:
        OH2, OW2 = OH // 2, OW // 2
        t = t.reshape(N, C, KH * KW, OH2, 2, OW2, 2)
        t = t.transpose(4, 6, 0, 3, 5, 1, 2)                     # [2,2,N,OH2,OW2,C,KK]
        return t.reshape(4, N * OH2 * OW2, K)
    t = t.transpose(0, 3, 4, 1, 2)                               # [N, OH, OW, C, KK]
    return t.reshape(N * OH * OW, K)


class CNNBlockPallas:
    """Pallas TPU equivalent of the PyTorch CNNBlock (training-mode BatchNorm).

    Conv2d(in, out, k, stride, padding) -> BatchNorm2d(out) -> ReLU
    [-> MaxPool2d(2) if pool].  Input/output layout is NCHW, like PyTorch.
    """

    def __init__(self, in_channels, out_channels, kernel_size, stride, padding,
                 pool=False, key=None, tile_m=_DEFAULT_TILE_M):
        self.in_channels = in_channels
        self.out_channels = out_channels
        self.kernel_size = kernel_size
        self.stride = stride
        self.padding = padding
        self.pool = pool
        self.tile_m = tile_m

        if key is None:
            key = jax.random.PRNGKey(0)
        kw_key, kb_key = jax.random.split(key)
        fan_in = in_channels * kernel_size * kernel_size
        bound = 1.0 / math.sqrt(fan_in)
        # Same param shapes / init family as torch.nn.Conv2d.
        self.conv_w = jax.random.uniform(
            kw_key, (out_channels, in_channels, kernel_size, kernel_size),
            dtype=jnp.float32, minval=-bound, maxval=bound)
        # Kept only for API parity with nn.Conv2d(bias=True): a per-channel
        # constant before batch-stat BN is exactly cancelled by the mean
        # subtraction, so the kernels never read it.
        self.conv_b = jax.random.uniform(
            kb_key, (out_channels,), dtype=jnp.float32,
            minval=-bound, maxval=bound)
        # BatchNorm2d defaults: weight=1, bias=0, eps=1e-5 (training-mode stats).
        self.bn_gamma = jnp.ones((out_channels,), jnp.float32)
        self.bn_beta = jnp.zeros((out_channels,), jnp.float32)
        self.bn_eps = 1e-5

    def __call__(self, x_nchw):
        N, _, H, W = x_nchw.shape
        KS, OC = self.kernel_size, self.out_channels
        K = self.in_channels * KS * KS
        Kp = _round_up(K, _LANES)          # lane-dense contraction dim
        OCp = _round_up(OC, _LANES)        # lane-dense output channels
        # TODO(synk): when 4*OC <= 128 on the pool path, pack the 4 pooling taps
        # into the lane dimension instead of zero-padding OC to 128 (the lane
        # padding inflates y / pass-B traffic by OCp/OC for tiny-OC layers).

        OH = (H + 2 * self.padding - KS) // self.stride + 1
        OW = (W + 2 * self.padding - KS) // self.stride + 1
        fused_pool = self.pool and (OH % 2 == 0) and (OW % 2 == 0)

        # ----- XLA glue: bf16 patch extraction, K / lane / row zero-padding -----
        # Invariant relied on by the stats path: all pads are ZERO, so padded K
        # columns, padded rows, and padded channels contribute exactly 0 to y
        # and to the batch sums; padded channels also get gamma=0 / beta=0.
        patches = _im2col(x_nchw, KS, self.stride, self.padding, fused_pool)
        w_kxo = jnp.pad(self.conv_w.reshape(OC, K).T,
                        ((0, Kp - K), (0, OCp - OC))).astype(jnp.bfloat16)
        gamma = jnp.pad(self.bn_gamma, (0, OCp - OC))
        beta = jnp.pad(self.bn_beta, (0, OCp - OC))

        if fused_pool:
            q = patches.shape[1]                        # N*OH2*OW2 rows per tap
            tm, qp = _pick_tiling(q, self.tile_m)
            patches = jnp.pad(patches, ((0, 0), (0, qp - q), (0, Kp - K)))
            patches = patches.reshape(4 * qp, Kp)
            m_real = 4 * q
        else:
            m = patches.shape[0]
            tm, mp = _pick_tiling(m, self.tile_m)
            patches = jnp.pad(patches, ((0, mp - m), (0, Kp - K)))
            m_real = m

        # ----- pass A: conv matmul (bf16 y) + packed per-channel partials -----
        y, stats = conv_matmul_stats(patches, w_kxo, tm)

        # ----- batch-norm affine from batch statistics (tiny OCp-sized math) ---
        # NOTE: var = E[y^2] - mean^2 in f32 is cancellation-prone when
        # |mean| >> std; acceptable at bf16-matmul accuracy (see tolerance).
        cnt = jnp.float32(m_real)
        stats = stats.reshape(-1, _SUBLANES, OCp)       # rows 2..7 never read
        mean = jnp.sum(stats[:, 0, :], axis=0) / cnt
        ex2 = jnp.sum(stats[:, 1, :], axis=0) / cnt
        var = jnp.maximum(ex2 - mean * mean, 0.0)
        inv = jax.lax.rsqrt(var + self.bn_eps)          # once per channel
        scale = (gamma * inv).reshape(1, OCp)
        shift = (beta - mean * gamma * inv).reshape(1, OCp)

        # ----- pass B: normalize + ReLU (+ fused 2x2 max-pool) -----
        if fused_pool:
            OH2, OW2 = OH // 2, OW // 2
            out = bn_relu_pool(y, scale, shift, tm, qp)            # (qp, OCp)
            out = out[:q, :OC].reshape(N, OH2, OW2, OC)
        else:
            out = bn_relu(y, scale, shift, tm)                     # (Mp, OCp)
            out = out[:m_real, :OC].reshape(N, OH, OW, OC)
            if self.pool:
                # TODO(synk): odd OH/OW 2x2 max-pool (floor) falls back to XLA
                # reduce_window; add a cropped fused-pool path if this matters.
                out = jax.lax.reduce_window(
                    out[:, :OH // 2 * 2, :OW // 2 * 2, :], -jnp.inf, jax.lax.max,
                    (1, 2, 2, 1), (1, 2, 2, 1), "VALID")

        # TODO(synk): when CNNBlocks are chained, keep the OCp-padded NHWC slab
        # and skip this crop + NHWC->NCHW transpose (each is a full extra HBM
        # pass); kept here for PyTorch parity of the standalone forward.
        return out.transpose(0, 3, 1, 2)                # NHWC -> NCHW


# ------------------------------ reference ----------------------------------- #

def reference_cnn_block(x, conv_w, conv_b, gamma, beta, eps, stride, padding,
                        pool):
    """Plain-JAX f32 reference matching the PyTorch CNNBlock forward."""
    y = jax.lax.conv_general_dilated(
        x, conv_w, window_strides=(stride, stride),
        padding=[(padding, padding), (padding, padding)],
        dimension_numbers=("NCHW", "OIHW", "NCHW"))
    y = y + conv_b.reshape(1, -1, 1, 1)
    mean = jnp.mean(y, axis=(0, 2, 3), keepdims=True)
    var = jnp.mean(jnp.square(y - mean), axis=(0, 2, 3), keepdims=True)
    y = (y - mean) * jax.lax.rsqrt(var + eps)
    y = y * gamma.reshape(1, -1, 1, 1) + beta.reshape(1, -1, 1, 1)
    y = jnp.maximum(y, 0.0)
    if pool:
        y = jax.lax.reduce_window(y, -jnp.inf, jax.lax.max,
                                  (1, 1, 2, 2), (1, 1, 2, 2), "VALID")
    return y


# --------------------------------- driver ----------------------------------- #

if __name__ == "__main__":
    key = jax.random.PRNGKey(0)
    x_key, k1, k2, g_key, b_key = jax.random.split(key, 5)

    N, C, H, W = 2, 4, 16, 16
    OC = 8
    x = jax.random.normal(x_key, (N, C, H, W), dtype=jnp.float32)

    # Block 1: stride 1, padding 1, fused 2x2 max-pool path (multi-tile pass A).
    blk1 = CNNBlockPallas(C, OC, 3, 1, 1, pool=True, key=k1)
    # non-default BN affine so the scale/shift path is exercised numerically
    blk1.bn_gamma = jax.random.uniform(g_key, (OC,), minval=0.5, maxval=1.5)
    blk1.bn_beta = 0.1 * jax.random.normal(b_key, (OC,))
    out1 = jax.block_until_ready(jax.jit(blk1.__call__)(x))
    assert out1.shape == (N, OC, H // 2, W // 2), out1.shape
    ref1 = reference_cnn_block(x, blk1.conv_w, blk1.conv_b, blk1.bn_gamma,
                               blk1.bn_beta, blk1.bn_eps, 1, 1, True)
    err1 = float(jnp.max(jnp.abs(out1 - ref1)))

    # Block 2: stride 2, no pool (exercises the non-pool kernel + row padding).
    blk2 = CNNBlockPallas(C, OC, 3, 2, 1, pool=False, key=k2)
    out2 = jax.block_until_ready(jax.jit(blk2.__call__)(x))
    assert out2.shape == (N, OC, H // 2, W // 2), out2.shape
    ref2 = reference_cnn_block(x, blk2.conv_w, blk2.conv_b, blk2.bn_gamma,
                               blk2.bn_beta, blk2.bn_eps, 2, 1, False)
    err2 = float(jnp.max(jnp.abs(out2 - ref2)))

    for o in (out1, out2):
        assert bool(jnp.all(jnp.isfinite(o)))
        assert bool(jnp.all(o >= 0.0))          # ReLU / max-pool post-condition
    # bf16 matmul inputs + bf16 y round trip vs. the f32 reference
    assert err1 < 1e-1, err1
    assert err2 < 1e-1, err2

    print("KERNEL_OK")
</pallas_src>

<mosaic_0001>
module attributes {stable_mosaic.version = 11 : i64} {
  func.func @_conv_stats_kernel(%arg0: i32, %arg1: memref<64x128xbf16, #tpu.memory_space<vmem>>, %arg2: memref<128x128xbf16, #tpu.memory_space<vmem>>, %arg3: memref<64x128xbf16, #tpu.memory_space<vmem>>, %arg4: memref<8x128xf32, #tpu.memory_space<vmem>>) attributes {dimension_semantics = [#tpu.dimension_semantics<parallel>], iteration_bounds = array<i64: 8>, scalar_prefetch = 0 : i64, scratch_operands = 0 : i64, tpu.core_type = #tpu.core_type<tc>, window_params = [{transform_indices = @transform_0, window_bounds = array<i64: 64, 128>}, {pipeline_mode = #tpu.pipeline_mode<synchronous>, transform_indices = @transform_1, window_bounds = array<i64: 128, 128>}, {transform_indices = @transform_2, window_bounds = array<i64: 64, 128>}, {transform_indices = @transform_3, window_bounds = array<i64: 8, 128>}]} {
    %c0 = arith.constant 0 : index
    %c0_0 = arith.constant 0 : index
    %0 = vector.load %arg1[%c0, %c0_0] : memref<64x128xbf16, #tpu.memory_space<vmem>>, vector<64x128xbf16>
    %c0_1 = arith.constant 0 : index
    %c0_2 = arith.constant 0 : index
    %1 = vector.load %arg2[%c0_1, %c0_2] : memref<128x128xbf16, #tpu.memory_space<vmem>>, vector<128x128xbf16>
    %cst = arith.constant dense<0.000000e+00> : vector<64x128xf32>
    %2 = tpu.matmul %0, %1, %cst {dimension_numbers = #tpu.dot_dimension_numbers<[1], [0], [0], [1], [0, 0, 1, 1], [], []>} : vector<64x128xbf16>, vector<128x128xbf16>, vector<64x128xf32> -> vector<64x128xf32>
    %3 = arith.truncf %2 : vector<64x128xf32> to vector<64x128xbf16>
    %c0_3 = arith.constant 0 : index
    %c0_4 = arith.constant 0 : index
    %4 = vector.load %arg3[%c0_3, %c0_4] : memref<64x128xbf16, #tpu.memory_space<vmem>>, vector<64x128xbf16>
    tpu.vector_store %arg3[%c0_3, %c0_4], %3 {strides = array<i32>} : memref<64x128xbf16, #tpu.memory_space<vmem>>, vector<64x128xbf16>,
    %cst_5 = arith.constant dense<0.000000e+00> : vector<128xf32>
    %5 = vector.multi_reduction <add>, %2, %cst_5 [0] : vector<64x128xf32> to vector<128xf32>
    %6 = vector.shape_cast %5 : vector<128xf32> to vector<1x128xf32>
    %c0_6 = arith.constant 0 : index
    %c0_7 = arith.constant 0 : index
    %7 = vector.load %arg4[%c0_6, %c0_7] : memref<8x128xf32, #tpu.memory_space<vmem>>, vector<1x128xf32>
    tpu.vector_store %arg4[%c0_6, %c0_7], %6 {strides = array<i32>} : memref<8x128xf32, #tpu.memory_space<vmem>>, vector<1x128xf32>,
    %8 = arith.mulf %2, %2 : vector<64x128xf32>
    %cst_8 = arith.constant dense<0.000000e+00> : vector<128xf32>
    %9 = vector.multi_reduction <add>, %8, %cst_8 [0] : vector<64x128xf32> to vector<128xf32>
    %10 = vector.shape_cast %9 : vector<128xf32> to vector<1x128xf32>
    %c1 = arith.constant 1 : index
    %c0_9 = arith.constant 0 : index
    %11 = vector.load %arg4[%c1, %c0_9] : memref<8x128xf32, #tpu.memory_space<vmem>>, vector<1x128xf32>
    tpu.vector_store %arg4[%c1, %c0_9], %10 {strides = array<i32>} : memref<8x128xf32, #tpu.memory_space<vmem>>, vector<1x128xf32>,
    return
  }
  func.func @transform_0(%arg0: i32) -> (i32, i32) {
    %c0_i32 = arith.constant 0 : i32
    %c0_i32_0 = arith.constant 0 : i32
    return %arg0, %c0_i32 : i32, i32
  }
  func.func @transform_1(%arg0: i32) -> (i32, i32) {
    %c0_i32 = arith.constant 0 : i32
    %c0_i32_0 = arith.constant 0 : i32
    %c0_i32_1 = arith.constant 0 : i32
    return %c0_i32, %c0_i32_0 : i32, i32
  }
  func.func @transform_2(%arg0: i32) -> (i32, i32) {
    %c0_i32 = arith.constant 0 : i32
    %c0_i32_0 = arith.constant 0 : i32
    return %arg0, %c0_i32 : i32, i32
  }
  func.func @transform_3(%arg0: i32) -> (i32, i32) {
    %c0_i32 = arith.constant 0 : i32
    %c0_i32_0 = arith.constant 0 : i32
    return %arg0, %c0_i32 : i32, i32
  }
}

module attributes {stable_mosaic.version = 11 : i64} {
  func.func @_bn_relu_pool_kernel(%arg0: i32, %arg1: memref<64x128xbf16, #tpu.memory_space<vmem>>, %arg2: memref<64x128xbf16, #tpu.memory_space<vmem>>, %arg3: memref<64x128xbf16, #tpu.memory_space<vmem>>, %arg4: memref<64x128xbf16, #tpu.memory_space<vmem>>, %arg5: memref<1x128xf32, #tpu.memory_space<vmem>>, %arg6: memref<1x128xf32, #tpu.memory_space<vmem>>, %arg7: memref<64x128xf32, #tpu.memory_space<vmem>>) attributes {dimension_semantics = [#tpu.dimension_semantics<parallel>], iteration_bounds = array<i64: 2>, scalar_prefetch = 0 : i64, scratch_operands = 0 : i64, tpu.core_type = #tpu.core_type<tc>, window_params = [{transform_indices = @transform_0, window_bounds = array<i64: 64, 128>}, {transform_indices = @transform_1, window_bounds = array<i64: 64, 128>}, {transform_indices = @transform_2, window_bounds = array<i64: 64, 128>}, {transform_indices = @transform_3, window_bounds = array<i64: 64, 128>}, {pipeline_mode = #tpu.pipeline_mode<synchronous>, transform_indices = @transform_4, window_bounds = array<i64: 1, 128>}, {pipeline_mode = #tpu.pipeline_mode<synchronous>, transform_indices = @transform_5, window_bounds = array<i64: 1, 128>}, {transform_indices = @transform_6, window_bounds = array<i64: 64, 128>}]} {
    %c0 = arith.constant 0 : index
    %c0_0 = arith.constant 0 : index
    %0 = vector.load %arg5[%c0, %c0_0] : memref<1x128xf32, #tpu.memory_space<vmem>>, vector<1x128xf32>
    %1 = vector.shape_cast %0 : vector<1x128xf32> to vector<1x128xf32>
    %2 = vector.broadcast %1 : vector<1x128xf32> to vector<64x128xf32>
    %c0_1 = arith.constant 0 : index
    %c0_2 = arith.constant 0 : index
    %3 = vector.load %arg6[%c0_1, %c0_2] : memref<1x128xf32, #tpu.memory_space<vmem>>, vector<1x128xf32>
    %4 = vector.shape_cast %3 : vector<1x128xf32> to vector<1x128xf32>
    %5 = vector.broadcast %4 : vector<1x128xf32> to vector<64x128xf32>
    %c0_3 = arith.constant 0 : index
    %c0_4 = arith.constant 0 : index
    %6 = vector.load %arg1[%c0_3, %c0_4] : memref<64x128xbf16, #tpu.memory_space<vmem>>, vector<64x128xbf16>
    %7 = arith.extf %6 : vector<64x128xbf16> to vector<64x128xf32>
    %8 = arith.mulf %7, %2 : vector<64x128xf32>
    %9 = arith.addf %8, %5 : vector<64x128xf32>
    %cst = arith.constant 0.000000e+00 : f32
    %10 = vector.broadcast %cst : f32 to vector<64x128xf32>
    %11 = arith.maximumf %9, %10 : vector<64x128xf32>
    %c0_5 = arith.constant 0 : index
    %c0_6 = arith.constant 0 : index
    %12 = vector.load %arg2[%c0_5, %c0_6] : memref<64x128xbf16, #tpu.memory_space<vmem>>, vector<64x128xbf16>
    %13 = arith.extf %12 : vector<64x128xbf16> to vector<64x128xf32>
    %14 = arith.mulf %13, %2 : vector<64x128xf32>
    %15 = arith.addf %14, %5 : vector<64x128xf32>
    %cst_7 = arith.constant 0.000000e+00 : f32
    %16 = vector.broadcast %cst_7 : f32 to vector<64x128xf32>
    %17 = arith.maximumf %15, %16 : vector<64x128xf32>
    %18 = arith.maximumf %11, %17 : vector<64x128xf32>
    %c0_8 = arith.constant 0 : index
    %c0_9 = arith.constant 0 : index
    %19 = vector.load %arg3[%c0_8, %c0_9] : memref<64x128xbf16, #tpu.memory_space<vmem>>, vector<64x128xbf16>
    %20 = arith.extf %19 : vector<64x128xbf16> to vector<64x128xf32>
    %21 = arith.mulf %20, %2 : vector<64x128xf32>
    %22 = arith.addf %21, %5 : vector<64x128xf32>
    %cst_10 = arith.constant 0.000000e+00 : f32
    %23 = vector.broadcast %cst_10 : f32 to vector<64x128xf32>
    %24 = arith.maximumf %22, %23 : vector<64x128xf32>
    %c0_11 = arith.constant 0 : index
    %c0_12 = arith.constant 0 : index
    %25 = vector.load %arg4[%c0_11, %c0_12] : memref<64x128xbf16, #tpu.memory_space<vmem>>, vector<64x128xbf16>
    %26 = arith.extf %25 : vector<64x128xbf16> to vector<64x128xf32>
    %27 = arith.mulf %26, %2 : vector<64x128xf32>
    %28 = arith.addf %27, %5 : vector<64x128xf32>
    %cst_13 = arith.constant 0.000000e+00 : f32
    %29 = vector.broadcast %cst_13 : f32 to vector<64x128xf32>
    %30 = arith.maximumf %28, %29 : vector<64x128xf32>
    %31 = arith.maximumf %24, %30 : vector<64x128xf32>
    %32 = arith.maximumf %18, %31 : vector<64x128xf32>
    %c0_14 = arith.constant 0 : index
    %c0_15 = arith.constant 0 : index
    %33 = vector.load %arg7[%c0_14, %c0_15] : memref<64x128xf32, #tpu.memory_space<vmem>>, vector<64x128xf32>
    tpu.vector_store %arg7[%c0_14, %c0_15], %32 {strides = array<i32>} : memref<64x128xf32, #tpu.memory_space<vmem>>, vector<64x128xf32>,
    return
  }
  func.func @transform_0(%arg0: i32) -> (i32, i32) {
    %c0_i32 = arith.constant 0 : i32
    %0 = arith.addi %arg0, %c0_i32 : i32
    %c0_i32_0 = arith.constant 0 : i32
    %c0_i32_1 = arith.constant 0 : i32
    return %0, %c0_i32_0 : i32, i32
  }
  func.func @transform_1(%arg0: i32) -> (i32, i32) {
    %c2_i32 = arith.constant 2 : i32
    %0 = arith.addi %arg0, %c2_i32 : i32
    %c0_i32 = arith.constant 0 : i32
    %c0_i32_0 = arith.constant 0 : i32
    return %0, %c0_i32 : i32, i32
  }
  func.func @transform_2(%arg0: i32) -> (i32, i32) {
    %c4_i32 = arith.constant 4 : i32
    %0 = arith.addi %arg0, %c4_i32 : i32
    %c0_i32 = arith.constant 0 : i32
    %c0_i32_0 = arith.constant 0 : i32
    return %0, %c0_i32 : i32, i32
  }
  func.func @transform_3(%arg0: i32) -> (i32, i32) {
    %c6_i32 = arith.constant 6 : i32
    %0 = arith.addi %arg0, %c6_i32 : i32
    %c0_i32 = arith.constant 0 : i32
    %c0_i32_0 = arith.constant 0 : i32
    return %0, %c0_i32 : i32, i32
  }
  func.func @transform_4(%arg0: i32) -> (i32, i32) {
    %c0_i32 = arith.constant 0 : i32
    %c0_i32_0 = arith.constant 0 : i32
    %c0_i32_1 = arith.constant 0 : i32
    return %c0_i32, %c0_i32_0 : i32, i32
  }
  func.func @transform_5(%arg0: i32) -> (i32, i32) {
    %c0_i32 = arith.constant 0 : i32
    %c0_i32_0 = arith.constant 0 : i32
    %c0_i32_1 = arith.constant 0 : i32
    return %c0_i32, %c0_i32_0 : i32, i32
  }
  func.func @transform_6(%arg0: i32) -> (i32, i32) {
    %c0_i32 = arith.constant 0 : i32
    %c0_i32_0 = arith.constant 0 : i32
    return %arg0, %c0_i32 : i32, i32
  }
}

</mosaic_0001>

<llo_original>
// kernel: a_call__.2
$region0: #{a_call__.2}
  #allocation0 [shape = 'u32[]', space=smem, size = 0x4, offset = 0x4, fixed_abs, tag = 'smem constant byte address 0x4 - core index']
  #allocation1 [shape = 'u32[144,128]{1,0:T(1,128)}', space=vmem, size = 0x12000, scoped, tag = 'internal scratch']
  %s0 = inlined_call_operand.vmem [shape: bf16[512,128], index: 0, kind: input, shape index: {}]
  %s1 = inlined_call_operand.vmem [shape: bf16[128,128], index: 1, kind: input, shape index: {}]
  %s2 = inlined_call_operand.vmem [shape: bf16[512,128], index: 2, kind: output, shape index: {0}]
  %s3 = inlined_call_operand.vmem [shape: f32[64,128], index: 3, kind: output, shape index: {1}]
  %4 = xla_tuple %s2, %s3
  %s5 = sld [smem:[#allocation0]]
  $region49: #{a_call__.2} parent=0
    _
  %s7 = ssub.s32 1, %s5
  %s8 = scalar_select 0, %s7, %s5
  loop: start=0, step=1, limit=10
  $region2: #{a_call__.2} parent=0 // loop_pre_header
    _
  $region3: #{a_call__.2} parent=0 // loop_header
    %s10 = sphi 0, %s14
    %p11 = scmp.ge.s32.totalorder %s10, 10
    %s20 = sphi 0, %s22
    %s23 = sphi 0, %s20
    %s24 = sphi 0, %s23
    %s40 = sphi 0, %s24
    %s44 = sphi 0, %s44
    %s46 = sphi 0, %s44
    %s47 = sphi 0, %s46
    %s61 = sphi 0, %s47
    %s67 = sphi 0, %s69
    %s70 = sphi 0, %s67
    %s71 = sphi 0, %s70
    %s87 = sphi 0, %s71
    %s93 = sphi 0, %s95
    %s96 = sphi 0, %s93
    %s97 = sphi 0, %s96
    %s113 = sphi 0, %s97
  $region4: #{a_call__.2} parent=0 // loop_header_branch
    %13 = sbr.rel (%p11) target = $region8
  $region5: #{a_call__.2} parent=0 // loop_body
    %s15 = ssub.s32 %s10, 1
    %s16 = ssub.s32 %s10, 2
    %s17 = sadd.s32 %s10, 1
    %s18 = ssub.s32 %s10, %s17
    %p19 = scmp.eq.s32.totalorder %s18, 0
    %s21 = sadd.s32 %s20, 1
    %s22 = scalar_select %p19, %s20, %s21
    %p25 = pneg %p19
    %p26 = scmp.eq.s32.totalorder %s10, 7
    %p27 = por %p25, %p26
    %p28 = scmp.ne.s32.totalorder %s20, %s23
    %p29 = scmp.eq.s32.totalorder %s10, 0
    %p30 = por %p28, %p29
    %p31 = scmp.ne.s32.totalorder %s20, %s23
    %p32 = scmp.eq.s32.totalorder %s15, 7
    %p33 = por %p31, %p32
    %p34 = scmp.ne.s32.totalorder %s23, %s24
    %p35 = scmp.eq.s32.totalorder %s15, 0
    %p36 = por %p34, %p35
    %p37 = scmp.ne.s32.totalorder %s23, %s24
    %p38 = scmp.eq.s32.totalorder %s16, 7
    %p39 = por %p37, %p38
    %p41 = scmp.ne.s32.totalorder %s24, %s40
    %p42 = scmp.eq.s32.totalorder %s16, 0
    %p43 = por %p41, %p42
    %s45 = sadd.s32 %s44, 1
    %p48 = scmp.eq.s32.totalorder %s10, 7
    %p49 = scmp.ne.s32.totalorder %s44, %s46
    %p50 = scmp.eq.s32.totalorder %s10, 0
    %p51 = por %p49, %p50
    %p52 = scmp.ne.s32.totalorder %s44, %s46
    %p53 = scmp.eq.s32.totalorder %s15, 7
    %p54 = por %p52, %p53
    %p55 = scmp.ne.s32.totalorder %s46, %s47
    %p56 = scmp.eq.s32.totalorder %s15, 0
    %p57 = por %p55, %p56
    %p58 = scmp.ne.s32.totalorder %s46, %s47
    %p59 = scmp.eq.s32.totalorder %s16, 7
    %p60 = por %p58, %p59
    %p62 = scmp.ne.s32.totalorder %s47, %s61
    %p63 = scmp.eq.s32.totalorder %s16, 0
    %p64 = por %p62, %p63
    %s65 = ssub.s32 %s10, %s17
    %p66 = scmp.eq.s32.totalorder %s65, 0
    %s68 = sadd.s32 %s67, 1
    %s69 = scalar_select %p66, %s67, %s68
    %p72 = pneg %p66
    %p73 = scmp.eq.s32.totalorder %s10, 7
    %p74 = por %p72, %p73
    %p75 = scmp.ne.s32.totalorder %s67, %s70
    %p76 = scmp.eq.s32.totalorder %s10, 0
    %p77 = por %p75, %p76
    %p78 = scmp.ne.s32.totalorder %s67, %s70
    %p79 = scmp.eq.s32.totalorder %s15, 7
    %p80 = por %p78, %p79
    %p81 = scmp.ne.s32.totalorder %s70, %s71
    %p82 = scmp.eq.s32.totalorder %s15, 0
    %p83 = por %p81, %p82
    %p84 = scmp.ne.s32.totalorder %s70, %s71
    %p85 = scmp.eq.s32.totalorder %s16, 7
    %p86 = por %p84, %p85
    %p88 = scmp.ne.s32.totalorder %s71, %s87
    %p89 = scmp.eq.s32.totalorder %s16, 0
    %p90 = por %p88, %p89
    %s91 = ssub.s32 %s10, %s17
    %p92 = scmp.eq.s32.totalorder %s91, 0
    %s94 = sadd.s32 %s93, 1
    %s95 = scalar_select %p92, %s93, %s94
    %p98 = pneg %p92
    %p99 = scmp.eq.s32.totalorder %s10, 7
    %p100 = por %p98, %p99
    %p101 = scmp.ne.s32.totalorder %s93, %s96
    %p102 = scmp.eq.s32.totalorder %s10, 0
    %p103 = por %p101, %p102
    %p104 = scmp.ne.s32.totalorder %s93, %s96
    %p105 = scmp.eq.s32.totalorder %s15, 7
    %p106 = por %p104, %p105
    %p107 = scmp.ne.s32.totalorder %s96, %s97
    %p108 = scmp.eq.s32.totalorder %s15, 0
    %p109 = por %p107, %p108
    %p110 = scmp.ne.s32.totalorder %s96, %s97
    %p111 = scmp.eq.s32.totalorder %s16, 7
    %p112 = por %p110, %p111
    %p114 = scmp.ne.s32.totalorder %s97, %s113
    %p115 = scmp.eq.s32.totalorder %s16, 0
    %p116 = por %p114, %p115
    %p117 = scmp.le.s32.totalorder 1, %s10
    %p118 = scmp.lt.s32.totalorder %s10, 9
    %p119 = pnand %p117, %p118
    %p120 = pneg %p119
    // Predicated region
    $region9: #{a_call__.2} parent=5 // pred_check
      _
    $region10: #{a_call__.2} parent=5 // pred_check_branch
      %122 = sbr.rel (%p119) target = $region12
    $region11: #{a_call__.2} parent=5 // pred_region
      %s123 = ssub.s32 %s10, 1
      // Predicated region
      $region13: #{a_call__.2} parent=11 // pred_check
        %p124 = pneg %p57
      $region14: #{a_call__.2} parent=11 // pred_check_branch
        %126 = sbr.rel (%p124) target = $region16
      $region15: #{a_call__.2} parent=11 // pred_region
        _
      $region16: #{a_call__.2} parent=11 // pred_fallthru
        _
    $region12: #{a_call__.2} parent=5 // pred_fallthru
      _
    %p127 = scmp.lt.s32.totalorder %s10, 8
    // Predicated region
    $region17: #{a_call__.2} parent=5 // pred_check
      %p128 = pneg %p127
    $region18: #{a_call__.2} parent=5 // pred_check_branch
      %130 = sbr.rel (%p128) target = $region20
    $region19: #{a_call__.2} parent=5 // pred_region
      // Predicated region
      $region21: #{a_call__.2} parent=19 // pred_check
        %p131 = pneg %p30
      $region22: #{a_call__.2} parent=19 // pred_check_branch
        %133 = sbr.rel (%p131) target = $region24
      $region23: #{a_call__.2} parent=19 // pred_region
        %s134 = smul.u32 8, %s10
        %p135 = scmp.lt.s32.totalorder %s134, 63
        %s136 = scalar_select %p135, %s134, 63
        %s137 = smul.addr %s136, 4
        %s138 = scalar_lea.vmem %s0, %s137
        %s139 = smul.u32 8, %s10
      $region24: #{a_call__.2} parent=19 // pred_fallthru
        _
    $region20: #{a_call__.2} parent=5 // pred_fallthru
      _
    %p140 = scmp.le.s32.totalorder 1, %s10
    %p141 = scmp.lt.s32.totalorder %s10, 9
    %p142 = pnand %p140, %p141
    %p143 = pneg %p142
    // Predicated region
    $region25: #{a_call__.2} parent=5 // pred_check
      _
    $region26: #{a_call__.2} parent=5 // pred_check_branch
      %145 = sbr.rel (%p142) target = $region28
    $region27: #{a_call__.2} parent=5 // pred_region
      %s146 = ssub.s32 %s10, 1
      %s147 = smul.u32 8, %s15
      %p148 = scmp.lt.s32.totalorder %s147, 63
      %s149 = scalar_select %p148, %s147, 63
      %s150 = smul.addr %s149, 4
      %s151 = scalar_lea.vmem %s0, %s150
      %p152 = pneg %p36
      %p153 = pneg %p33
      %p154 = pneg %p57
      %p155 = pneg %p54
      %p156 = pneg %p83
      %p157 = pneg %p80
      %s158 = smul.u32 8, %s15
      %p159 = scmp.lt.s32.totalorder %s158, 63
      %s160 = scalar_select %p159, %s158, 63
      %s161 = smul.addr %s160, 4
      %s162 = scalar_lea.vmem %s2, %s161
      %p163 = pneg %p109
      %p164 = pneg %p106
      %p165 = scmp.lt.s32.totalorder %s15, 7
      %s166 = scalar_select %p165, %s15, 7
      %s167 = smul.addr %s166, 8
      %s168 = scalar_lea.vmem %s3, %s167
      %s169 = smul.u32 8, %s15
      %p170 = scmp.lt.s32.totalorder %s169, 63
      %s171 = scalar_select %p170, %s169, 63
      %s172 = smul.addr %s171, 4
      %s173 = scalar_lea.vmem %s0, %s172
      %s174 = smul.u32 8, %s15
      %s175 = smul.u32 8, %s15
      %p176 = scmp.lt.s32.totalorder %s175, 63
      %s177 = scalar_select %p176, %s175, 63
      %s178 = smul.addr %s177, 4
      %s179 = scalar_lea.vmem %s2, %s178
      %s180 = smul.u32 8, %s15
      %p181 = scmp.lt.s32.totalorder %s15, 7
      %s182 = scalar_select %p181, %s15, 7
      %s183 = smul.addr %s182, 8
      %s184 = scalar_lea.vmem %s3, %s183
      %v186 = vld [vmem:[%s173] sm:$0xf]
      %v187 = vld [vmem:[%s173 + $0x4] sm:$0xf]
      %v188 = vld [vmem:[%s173 + $0x8] sm:$0xf]
      %v189 = vld [vmem:[%s173 + $0xc] sm:$0xf]
      %v190 = vld [vmem:[%s173 + $0x10] sm:$0xf]
      %v191 = vld [vmem:[%s173 + $0x14] sm:$0xf]
      %v192 = vld [vmem:[%s173 + $0x18] sm:$0xf]
      %v193 = vld [vmem:[%s173 + $0x1c] sm:$0xf]
      %v194 = vld [vmem:[%s1] sm:$0xf]
      %v195 = vld [vmem:[%s1 + $0x4] sm:$0xf]
      %v196 = vld [vmem:[%s1 + $0x8] sm:$0xf]
      %v197 = vld [vmem:[%s1 + $0xc] sm:$0xf]
      %v198 = vld [vmem:[%s1 + $0x10] sm:$0xf]
      %v199 = vld [vmem:[%s1 + $0x14] sm:$0xf]
      %v200 = vld [vmem:[%s1 + $0x18] sm:$0xf]
      %v201 = vld [vmem:[%s1 + $0x1c] sm:$0xf]
      %v202 = vld [vmem:[%s1 + $0x20] sm:$0xf]
      %v203 = vld [vmem:[%s1 + $0x24] sm:$0xf]
      %v204 = vld [vmem:[%s1 + $0x28] sm:$0xf]
      %v205 = vld [vmem:[%s1 + $0x2c] sm:$0xf]
      %v206 = vld [vmem:[%s1 + $0x30] sm:$0xf]
      %v207 = vld [vmem:[%s1 + $0x34] sm:$0xf]
      %v208 = vld [vmem:[%s1 + $0x38] sm:$0xf]
      %v209 = vld [vmem:[%s1 + $0x3c] sm:$0xf]
      %v218 = vunpack.c.l.b16 %v186
      %v219 = vunpack.c.l.b16 %v187
      %v220 = vunpack.c.l.b16 %v188
      %v221 = vunpack.c.l.b16 %v189
      %v222 = vunpack.c.l.b16 %v190
      %v223 = vunpack.c.l.b16 %v191
      %v224 = vunpack.c.l.b16 %v192
      %v225 = vunpack.c.l.b16 %v193
      %v226 = vpack.c.b16 %v219, %v218
      %v227 = vpack.c.b16 %v221, %v220
      %v228 = vpack.c.b16 %v223, %v222
      %v229 = vpack.c.b16 %v225, %v224
      %v250 = vunpack.c.l.b16 %v194
      %v251 = vunpack.c.l.b16 %v195
      %v252 = vunpack.c.l.b16 %v196
      %v253 = vunpack.c.l.b16 %v197
      %v254 = vunpack.c.l.b16 %v198
      %v255 = vunpack.c.l.b16 %v199
      %v256 = vunpack.c.l.b16 %v200
      %v257 = vunpack.c.l.b16 %v201
      %v258 = vunpack.c.l.b16 %v202
      %v259 = vunpack.c.l.b16 %v203
      %v260 = vunpack.c.l.b16 %v204
      %v261 = vunpack.c.l.b16 %v205
      %v262 = vunpack.c.l.b16 %v206
      %v263 = vunpack.c.l.b16 %v207
      %v264 = vunpack.c.l.b16 %v208
      %v265 = vunpack.c.l.b16 %v209
      %v266 = vpack.c.b16 %v251, %v250
      %v267 = vpack.c.b16 %v253, %v252
      %v268 = vpack.c.b16 %v255, %v254
      %v269 = vpack.c.b16 %v257, %v256
      %v270 = vpack.c.b16 %v259, %v258
      %v271 = vpack.c.b16 %v261, %v260
      %v272 = vpack.c.b16 %v263, %v262
      %v273 = vpack.c.b16 %v265, %v264
      %282 = vmatprep.subr.bf16.mxu0 0
      %283 = vmatpush1.bf16.msra.mxu0 %v266
      %284 = vmatprep.subr.bf16.mxu0 0
      %285 = vmatpush1.bf16.msra.mxu0 %v267
      %286 = vmatprep.subr.bf16.mxu0 0
      %287 = vmatpush1.bf16.msra.mxu0 %v268
      %288 = vmatprep.subr.bf16.mxu0 0
      %289 = vmatpush1.bf16.msra.mxu0 %v269
      %290 = vmatprep.subr.bf16.mxu0 0
      %291 = vmatpush1.bf16.msra.mxu0 %v270
      %292 = vmatprep.subr.bf16.mxu0 0
      %293 = vmatpush1.bf16.msra.mxu0 %v271
      %294 = vmatprep.subr.bf16.mxu0 0
      %295 = vmatpush1.bf16.msra.mxu0 %v272
      %296 = vmatprep.subr.bf16.mxu0 0
      %297 = vmatpush1.bf16.msra.mxu0 %v273
      %298 = vmatprep.subr.bf16.mxu0 0
      %299 = vmatpush1.bf16.msra.mxu0 0
      %300 = vmatprep.subr.bf16.mxu0 0
      %301 = vmatpush1.bf16.msra.mxu0 0
      %302 = vmatprep.subr.bf16.mxu0 0
      %303 = vmatpush1.bf16.msra.mxu0 0
      %304 = vmatprep.subr.bf16.mxu0 0
      %305 = vmatpush1.bf16.msra.mxu0 0
      %306 = vmatprep.subr.bf16.mxu0 0
      %307 = vmatpush1.bf16.msra.mxu0 0
      %308 = vmatprep.subr.bf16.mxu0 0
      %309 = vmatpush1.bf16.msra.mxu0 0
      %310 = vmatprep.subr.bf16.mxu0 0
      %311 = vmatpush1.bf16.msra.mxu0 0
      %312 = vmatprep.subr.bf16.mxu0 0
      %313 = vmatpush1.bf16.msra.mxu0 0
      %314 = vmatprep.mubr.bf16.mxu0 0
      %315 = vmatmul.mubr.bf16.gmra.mrb[0].mxu0 %v226
      %v316 = vpop.f32.mrb[0].mxu0
      %v317 = vadd.f32 0.0, %v316
      %v318 = vpop.f32.mrb[0].mxu0
      %v319 = vpop.f32.mrb[0].mxu0
      %v320 = vadd.f32 0.0, %v319
      %v321 = vpop.f32.mrb[0].mxu0
      %322 = vmatprep.mubr.bf16.mxu0 0
      %323 = vmatmul.mubr.bf16.gmra.mrb[0].mxu0 %v227
      %v324 = vpop.f32.mrb[0].mxu0
      %v325 = vadd.f32 0.0, %v324
      %v326 = vpop.f32.mrb[0].mxu0
      %v327 = vpop.f32.mrb[0].mxu0
      %v328 = vadd.f32 0.0, %v327
      %v329 = vpop.f32.mrb[0].mxu0
      %330 = vmatprep.mubr.bf16.mxu0 0
      %331 = vmatmul.mubr.bf16.gmra.mrb[0].mxu0 %v228
      %v332 = vpop.f32.mrb[0].mxu0
      %v333 = vadd.f32 0.0, %v332
      %v334 = vpop.f32.mrb[0].mxu0
      %v335 = vpop.f32.mrb[0].mxu0
      %v336 = vadd.f32 0.0, %v335
      %v337 = vpop.f32.mrb[0].mxu0
      %338 = vmatprep.mubr.bf16.mxu0 0
      %339 = vmatmul.mubr.bf16.gmra.mrb[0].mxu0 %v229
      %v340 = vpop.f32.mrb[0].mxu0
      %v341 = vadd.f32 0.0, %v340
      %v342 = vpop.f32.mrb[0].mxu0
      %v343 = vpop.f32.mrb[0].mxu0
      %v344 = vadd.f32 0.0, %v343
      %v345 = vpop.f32.mrb[0].mxu0
      %346 = vdwg.mxu0
      %v347 = vpack.c.bf16 %v320, %v317
      %v348 = vpack.c.bf16 %v328, %v325
      %v349 = vpack.c.bf16 %v336, %v333
      %v350 = vpack.c.bf16 %v344, %v341
      %v355 = vunpack.c.l.b16 %v347
      %v356 = vunpack.c.h.b16 %v347
      %v357 = vunpack.c.l.b16 %v348
      %v358 = vunpack.c.h.b16 %v348
      %v359 = vunpack.c.l.b16 %v349
      %v360 = vunpack.c.h.b16 %v349
      %v361 = vunpack.c.l.b16 %v350
      %v362 = vunpack.c.h.b16 %v350
      %v363 = vpack.c.b16 %v355, %v355
      %v364 = vpack.c.b16 %v356, %v356
      %v365 = vpack.c.b16 %v357, %v357
      %v366 = vpack.c.b16 %v358, %v358
      %v367 = vpack.c.b16 %v359, %v359
      %v368 = vpack.c.b16 %v360, %v360
      %v369 = vpack.c.b16 %v361, %v361
      %v370 = vpack.c.b16 %v362, %v362
      %379 = vst [vmem:[%s179] sm:$0xf] %v363
      %380 = vst [vmem:[%s179 + $0x4] sm:$0xf] %v364
      %381 = vst [vmem:[%s179 + $0x8] sm:$0xf] %v365
      %382 = vst [vmem:[%s179 + $0xc] sm:$0xf] %v366
      %383 = vst [vmem:[%s179 + $0x10] sm:$0xf] %v367
      %384 = vst [vmem:[%s179 + $0x14] sm:$0xf] %v368
      %385 = vst [vmem:[%s179 + $0x18] sm:$0xf] %v369
      %386 = vst [vmem:[%s179 + $0x1c] sm:$0xf] %v370
      %v387 = vadd.f32 %v317, %v320
      %v388 = vadd.f32 %v387, %v325
      %v389 = vadd.f32 %v388, %v328
      %v390 = vadd.f32 %v389, %v333
      %v391 = vadd.f32 %v390, %v336
      %v392 = vadd.f32 %v391, %v341
      %v393 = vadd.f32 %v392, %v344
      %v394 = vrot.slane %v393, 4
      %v395 = vadd.f32 %v393, %v394
      %v396 = vrot.slane %v395, 2
      %v397 = vadd.f32 %v395, %v396
      %v398 = vrot.slane %v397, 1
      %v399 = vadd.f32 %v397, %v398
      %400 = vst [vmem:[%s184] sm:$0x1] %v399
      %v401 = vmul.f32 %v317, %v317
      %v402 = vmul.f32 %v320, %v320
      %v403 = vmul.f32 %v325, %v325
      %v404 = vmul.f32 %v328, %v328
      %v405 = vmul.f32 %v333, %v333
      %v406 = vmul.f32 %v336, %v336
      %v407 = vmul.f32 %v341, %v341
      %v408 = vmul.f32 %v344, %v344
      %v409 = vadd.f32 %v401, %v402
      %v410 = vadd.f32 %v409, %v403
      %v411 = vadd.f32 %v410, %v404
      %v412 = vadd.f32 %v411, %v405
      %v413 = vadd.f32 %v412, %v406
      %v414 = vadd.f32 %v413, %v407
      %v415 = vadd.f32 %v414, %v408
      %v416 = vrot.slane %v415, 4
      %v417 = vadd.f32 %v415, %v416
      %v418 = vrot.slane %v417, 2
      %v419 = vadd.f32 %v417, %v418
      %v420 = vrot.slane %v419, 1
      %v421 = vadd.f32 %v419, %v420
      %422 = vst [vmem:[%s184 + $0x1] sm:$0x1] %v421
      %s423 = smul.u32 8, %s15
      %p424 = scmp.lt.s32.totalorder %s423, 63
      %s425 = scalar_select %p424, %s423, 63
      %s426 = smul.addr %s425, 4
      %s427 = scalar_lea.vmem %s2, %s426
      %p428 = scmp.lt.s32.totalorder %s15, 7
      %s429 = scalar_select %p428, %s15, 7
      %s430 = smul.addr %s429, 8
      %s431 = scalar_lea.vmem %s3, %s430
      // Predicated region
      $region29: #{a_call__.2} parent=27 // pred_check
        %p432 = pneg %p80
      $region30: #{a_call__.2} parent=27 // pred_check_branch
        %434 = sbr.rel (%p432) target = $region32
      $region31: #{a_call__.2} parent=27 // pred_region
        %s435 = smul.u32 8, %s15
      $region32: #{a_call__.2} parent=27 // pred_fallthru
        _
      // Predicated region
      $region33: #{a_call__.2} parent=27 // pred_check
        %p436 = pneg %p106
      $region34: #{a_call__.2} parent=27 // pred_check_branch
        %438 = sbr.rel (%p436) target = $region36
      $region35: #{a_call__.2} parent=27 // pred_region
        _
      $region36: #{a_call__.2} parent=27 // pred_fallthru
        _
    $region28: #{a_call__.2} parent=5 // pred_fallthru
      _
    %p439 = scmp.le.s32.totalorder 2, %s10
    // Predicated region
    $region37: #{a_call__.2} parent=5 // pred_check
      %p440 = pneg %p439
    $region38: #{a_call__.2} parent=5 // pred_check_branch
      %442 = sbr.rel (%p440) target = $region40
    $region39: #{a_call__.2} parent=5 // pred_region
      %s443 = ssub.s32 %s10, 2
      // Predicated region
      $region41: #{a_call__.2} parent=39 // pred_check
        %p444 = pneg %p86
      $region42: #{a_call__.2} parent=39 // pred_check_branch
        %446 = sbr.rel (%p444) target = $region44
      $region43: #{a_call__.2} parent=39 // pred_region
        %s447 = smul.u32 8, %s16
        %p448 = scmp.lt.s32.totalorder %s447, 63
        %s449 = scalar_select %p448, %s447, 63
        %s450 = smul.addr %s449, 4
        %s451 = scalar_lea.vmem %s2, %s450
      $region44: #{a_call__.2} parent=39 // pred_fallthru
        _
      // Predicated region
      $region45: #{a_call__.2} parent=39 // pred_check
        %p452 = pneg %p112
      $region46: #{a_call__.2} parent=39 // pred_check_branch
        %454 = sbr.rel (%p452) target = $region48
      $region47: #{a_call__.2} parent=39 // pred_region
        %p455 = scmp.lt.s32.totalorder %s16, 7
        %s456 = scalar_select %p455, %s16, 7
        %s457 = smul.addr %s456, 8
        %s458 = scalar_lea.vmem %s3, %s457
      $region48: #{a_call__.2} parent=39 // pred_fallthru
        _
    $region40: #{a_call__.2} parent=5 // pred_fallthru
      _
  $region6: #{a_call__.2} parent=0 // loop_footer
    %s14 = sadd.s32 1, %s10
  $region7: #{a_call__.2} parent=0 // loop_footer_branch
    %9 = sbr.rel target = $region3
  $region8: #{a_call__.2} parent=0 // loop_exit
    _

// kernel: a_call__.3
$region0: #{a_call__.3}
  #allocation0 [shape = 'u32[]', space=smem, size = 0x4, offset = 0x4, fixed_abs, tag = 'smem constant byte address 0x4 - core index']
  #allocation1 [shape = 'u32[144,128]{1,0:T(1,128)}', space=vmem, size = 0x12000, scoped, tag = 'internal scratch']
  %s0 = inlined_call_operand.vmem [shape: bf16[512,128], index: 0, kind: input, shape index: {}, may-alias: {0,1,2,3}]
  %s1 = inlined_call_operand.vmem [shape: bf16[512,128], index: 1, kind: input, shape index: {}, may-alias: {0,1,2,3}]
  %s2 = inlined_call_operand.vmem [shape: bf16[512,128], index: 2, kind: input, shape index: {}, may-alias: {0,1,2,3}]
  %s3 = inlined_call_operand.vmem [shape: bf16[512,128], index: 3, kind: input, shape index: {}, may-alias: {0,1,2,3}]
  %s4 = inlined_call_operand.vmem [shape: f32[1,128], index: 4, kind: input, shape index: {}]
  %s5 = inlined_call_operand.vmem [shape: f32[1,128], index: 5, kind: input, shape index: {}]
  %s6 = inlined_call_operand.vmem [shape: f32[128,128], index: 6, kind: output, shape index: {}]
  %s7 = sld [smem:[#allocation0]]
  $region57: #{a_call__.3} parent=0
    _
  %s9 = ssub.s32 1, %s7
  %s10 = scalar_select 0, %s9, %s7
  loop: start=0, step=1, limit=4
  $region2: #{a_call__.3} parent=0 // loop_pre_header
    _
  $region3: #{a_call__.3} parent=0 // loop_header
    %s12 = sphi 0, %s16
    %p13 = scmp.ge.s32.totalorder %s12, 4
    %s22 = sphi 0, %s24
    %s25 = sphi 0, %s22
    %s26 = sphi 0, %s25
    %s42 = sphi 0, %s26
    %s50 = sphi 0, %s52
    %s53 = sphi 0, %s50
    %s54 = sphi 0, %s53
    %s70 = sphi 0, %s54
    %s78 = sphi 0, %s80
    %s81 = sphi 0, %s78
    %s82 = sphi 0, %s81
    %s98 = sphi 0, %s82
    %s106 = sphi 0, %s108
    %s109 = sphi 0, %s106
    %s110 = sphi 0, %s109
    %s126 = sphi 0, %s110
    %s130 = sphi 0, %s130
    %s132 = sphi 0, %s130
    %s133 = sphi 0, %s132
    %s147 = sphi 0, %s133
    %s151 = sphi 0, %s151
    %s153 = sphi 0, %s151
    %s154 = sphi 0, %s153
    %s168 = sphi 0, %s154
    %s174 = sphi 0, %s176
    %s177 = sphi 0, %s174
    %s178 = sphi 0, %s177
    %s194 = sphi 0, %s178
  $region4: #{a_call__.3} parent=0 // loop_header_branch
    %15 = sbr.rel (%p13) target = $region8
  $region5: #{a_call__.3} parent=0 // loop_body
    %s17 = ssub.s32 %s12, 1
    %s18 = ssub.s32 %s12, 2
    %s19 = sadd.s32 %s12, 1
    %s20 = ssub.s32 %s12, %s19
    %p21 = scmp.eq.s32.totalorder %s20, 0
    %s23 = sadd.s32 %s22, 1
    %s24 = scalar_select %p21, %s22, %s23
    %p27 = pneg %p21
    %p28 = scmp.eq.s32.totalorder %s12, 1
    %p29 = por %p27, %p28
    %p30 = scmp.ne.s32.totalorder %s22, %s25
    %p31 = scmp.eq.s32.totalorder %s12, 0
    %p32 = por %p30, %p31
    %p33 = scmp.ne.s32.totalorder %s22, %s25
    %p34 = scmp.eq.s32.totalorder %s17, 1
    %p35 = por %p33, %p34
    %p36 = scmp.ne.s32.totalorder %s25, %s26
    %p37 = scmp.eq.s32.totalorder %s17, 0
    %p38 = por %p36, %p37
    %p39 = scmp.ne.s32.totalorder %s25, %s26
    %p40 = scmp.eq.s32.totalorder %s18, 1
    %p41 = por %p39, %p40
    %p43 = scmp.ne.s32.totalorder %s26, %s42
    %p44 = scmp.eq.s32.totalorder %s18, 0
    %p45 = por %p43, %p44
    %s46 = sadd.s32 %s12, 2
    %s47 = sadd.s32 %s19, 2
    %s48 = ssub.s32 %s46, %s47
    %p49 = scmp.eq.s32.totalorder %s48, 0
    %s51 = sadd.s32 %s50, 1
    %s52 = scalar_select %p49, %s50, %s51
    %p55 = pneg %p49
    %p56 = scmp.eq.s32.totalorder %s12, 1
    %p57 = por %p55, %p56
    %p58 = scmp.ne.s32.totalorder %s50, %s53
    %p59 = scmp.eq.s32.totalorder %s12, 0
    %p60 = por %p58, %p59
    %p61 = scmp.ne.s32.totalorder %s50, %s53
    %p62 = scmp.eq.s32.totalorder %s17, 1
    %p63 = por %p61, %p62
    %p64 = scmp.ne.s32.totalorder %s53, %s54
    %p65 = scmp.eq.s32.totalorder %s17, 0
    %p66 = por %p64, %p65
    %p67 = scmp.ne.s32.totalorder %s53, %s54
    %p68 = scmp.eq.s32.totalorder %s18, 1
    %p69 = por %p67, %p68
    %p71 = scmp.ne.s32.totalorder %s54, %s70
    %p72 = scmp.eq.s32.totalorder %s18, 0
    %p73 = por %p71, %p72
    %s74 = sadd.s32 %s12, 4
    %s75 = sadd.s32 %s19, 4
    %s76 = ssub.s32 %s74, %s75
    %p77 = scmp.eq.s32.totalorder %s76, 0
    %s79 = sadd.s32 %s78, 1
    %s80 = scalar_select %p77, %s78, %s79
    %p83 = pneg %p77
    %p84 = scmp.eq.s32.totalorder %s12, 1
    %p85 = por %p83, %p84
    %p86 = scmp.ne.s32.totalorder %s78, %s81
    %p87 = scmp.eq.s32.totalorder %s12, 0
    %p88 = por %p86, %p87
    %p89 = scmp.ne.s32.totalorder %s78, %s81
    %p90 = scmp.eq.s32.totalorder %s17, 1
    %p91 = por %p89, %p90
    %p92 = scmp.ne.s32.totalorder %s81, %s82
    %p93 = scmp.eq.s32.totalorder %s17, 0
    %p94 = por %p92, %p93
    %p95 = scmp.ne.s32.totalorder %s81, %s82
    %p96 = scmp.eq.s32.totalorder %s18, 1
    %p97 = por %p95, %p96
    %p99 = scmp.ne.s32.totalorder %s82, %s98
    %p100 = scmp.eq.s32.totalorder %s18, 0
    %p101 = por %p99, %p100
    %s102 = sadd.s32 %s12, 6
    %s103 = sadd.s32 %s19, 6
    %s104 = ssub.s32 %s102, %s103
    %p105 = scmp.eq.s32.totalorder %s104, 0
    %s107 = sadd.s32 %s106, 1
    %s108 = scalar_select %p105, %s106, %s107
    %p111 = pneg %p105
    %p112 = scmp.eq.s32.totalorder %s12, 1
    %p113 = por %p111, %p112
    %p114 = scmp.ne.s32.totalorder %s106, %s109
    %p115 = scmp.eq.s32.totalorder %s12, 0
    %p116 = por %p114, %p115
    %p117 = scmp.ne.s32.totalorder %s106, %s109
    %p118 = scmp.eq.s32.totalorder %s17, 1
    %p119 = por %p117, %p118
    %p120 = scmp.ne.s32.totalorder %s109, %s110
    %p121 = scmp.eq.s32.totalorder %s17, 0
    %p122 = por %p120, %p121
    %p123 = scmp.ne.s32.totalorder %s109, %s110
    %p124 = scmp.eq.s32.totalorder %s18, 1
    %p125 = por %p123, %p124
    %p127 = scmp.ne.s32.totalorder %s110, %s126
    %p128 = scmp.eq.s32.totalorder %s18, 0
    %p129 = por %p127, %p128
    %s131 = sadd.s32 %s130, 1
    %p134 = scmp.eq.s32.totalorder %s12, 1
    %p135 = scmp.ne.s32.totalorder %s130, %s132
    %p136 = scmp.eq.s32.totalorder %s12, 0
    %p137 = por %p135, %p136
    %p138 = scmp.ne.s32.totalorder %s130, %s132
    %p139 = scmp.eq.s32.totalorder %s17, 1
    %p140 = por %p138, %p139
    %p141 = scmp.ne.s32.totalorder %s132, %s133
    %p142 = scmp.eq.s32.totalorder %s17, 0
    %p143 = por %p141, %p142
    %p144 = scmp.ne.s32.totalorder %s132, %s133
    %p145 = scmp.eq.s32.totalorder %s18, 1
    %p146 = por %p144, %p145
    %p148 = scmp.ne.s32.totalorder %s133, %s147
    %p149 = scmp.eq.s32.totalorder %s18, 0
    %p150 = por %p148, %p149
    %s152 = sadd.s32 %s151, 1
    %p155 = scmp.eq.s32.totalorder %s12, 1
    %p156 = scmp.ne.s32.totalorder %s151, %s153
    %p157 = scmp.eq.s32.totalorder %s12, 0
    %p158 = por %p156, %p157
    %p159 = scmp.ne.s32.totalorder %s151, %s153
    %p160 = scmp.eq.s32.totalorder %s17, 1
    %p161 = por %p159, %p160
    %p162 = scmp.ne.s32.totalorder %s153, %s154
    %p163 = scmp.eq.s32.totalorder %s17, 0
    %p164 = por %p162, %p163
    %p165 = scmp.ne.s32.totalorder %s153, %s154
    %p166 = scmp.eq.s32.totalorder %s18, 1
    %p167 = por %p165, %p166
    %p169 = scmp.ne.s32.totalorder %s154, %s168
    %p170 = scmp.eq.s32.totalorder %s18, 0
    %p171 = por %p169, %p170
    %s172 = ssub.s32 %s12, %s19
    %p173 = scmp.eq.s32.totalorder %s172, 0
    %s175 = sadd.s32 %s174, 1
    %s176 = scalar_select %p173, %s174, %s175
    %p179 = pneg %p173
    %p180 = scmp.eq.s32.totalorder %s12, 1
    %p181 = por %p179, %p180
    %p182 = scmp.ne.s32.totalorder %s174, %s177
    %p183 = scmp.eq.s32.totalorder %s12, 0
    %p184 = por %p182, %p183
    %p185 = scmp.ne.s32.totalorder %s174, %s177
    %p186 = scmp.eq.s32.totalorder %s17, 1
    %p187 = por %p185, %p186
    %p188 = scmp.ne.s32.totalorder %s177, %s178
    %p189 = scmp.eq.s32.totalorder %s17, 0
    %p190 = por %p188, %p189
    %p191 = scmp.ne.s32.totalorder %s177, %s178
    %p192 = scmp.eq.s32.totalorder %s18, 1
    %p193 = por %p191, %p192
    %p195 = scmp.ne.s32.totalorder %s178, %s194
    %p196 = scmp.eq.s32.totalorder %s18, 0
    %p197 = por %p195, %p196
    %p198 = scmp.le.s32.totalorder 1, %s12
    %p199 = scmp.lt.s32.totalorder %s12, 3
    %p200 = pnand %p198, %p199
    %p201 = pneg %p200
    // Predicated region
    $region9: #{a_call__.3} parent=5 // pred_check
      _
    $region10: #{a_call__.3} parent=5 // pred_check_branch
      %203 = sbr.rel (%p200) target = $region12
    $region11: #{a_call__.3} parent=5 // pred_region
      %s204 = ssub.s32 %s12, 1
      // Predicated region
      $region13: #{a_call__.3} parent=11 // pred_check
        %p205 = pneg %p143
      $region14: #{a_call__.3} parent=11 // pred_check_branch
        %207 = sbr.rel (%p205) target = $region16
      $region15: #{a_call__.3} parent=11 // pred_region
        _
      $region16: #{a_call__.3} parent=11 // pred_fallthru
        _
      // Predicated region
      $region17: #{a_call__.3} parent=11 // pred_check
        %p208 = pneg %p164
      $region18: #{a_call__.3} parent=11 // pred_check_branch
        %210 = sbr.rel (%p208) target = $region20
      $region19: #{a_call__.3} parent=11 // pred_region
        _
      $region20: #{a_call__.3} parent=11 // pred_fallthru
        _
    $region12: #{a_call__.3} parent=5 // pred_fallthru
      _
    %p211 = scmp.lt.s32.totalorder %s12, 2
    // Predicated region
    $region21: #{a_call__.3} parent=5 // pred_check
      %p212 = pneg %p211
    $region22: #{a_call__.3} parent=5 // pred_check_branch
      %214 = sbr.rel (%p212) target = $region24
    $region23: #{a_call__.3} parent=5 // pred_region
      // Predicated region
      $region25: #{a_call__.3} parent=23 // pred_check
        %p215 = pneg %p32
      $region26: #{a_call__.3} parent=23 // pred_check_branch
        %217 = sbr.rel (%p215) target = $region28
      $region27: #{a_call__.3} parent=23 // pred_region
        %s218 = smul.u32 8, %s12
        %p219 = scmp.lt.s32.totalorder %s218, 63
        %s220 = scalar_select %p219, %s218, 63
        %s221 = smul.addr %s220, 4
        %s222 = scalar_lea.vmem %s0, %s221
        %s223 = smul.u32 8, %s12
      $region28: #{a_call__.3} parent=23 // pred_fallthru
        _
      // Predicated region
      $region29: #{a_call__.3} parent=23 // pred_check
        %p224 = pneg %p60
      $region30: #{a_call__.3} parent=23 // pred_check_branch
        %226 = sbr.rel (%p224) target = $region32
      $region31: #{a_call__.3} parent=23 // pred_region
        %s227 = sadd.s32 %s12, 2
        %s228 = smul.u32 8, %s227
        %p229 = scmp.lt.s32.totalorder %s228, 63
        %s230 = scalar_select %p229, %s228, 63
        %s231 = smul.addr %s230, 4
        %s232 = scalar_lea.vmem %s1, %s231
        %s233 = sadd.s32 %s12, 2
        %s234 = smul.u32 8, %s233
      $region32: #{a_call__.3} parent=23 // pred_fallthru
        _
      // Predicated region
      $region33: #{a_call__.3} parent=23 // pred_check
        %p235 = pneg %p88
      $region34: #{a_call__.3} parent=23 // pred_check_branch
        %237 = sbr.rel (%p235) target = $region36
      $region35: #{a_call__.3} parent=23 // pred_region
        %s238 = sadd.s32 %s12, 4
        %s239 = smul.u32 8, %s238
        %p240 = scmp.lt.s32.totalorder %s239, 63
        %s241 = scalar_select %p240, %s239, 63
        %s242 = smul.addr %s241, 4
        %s243 = scalar_lea.vmem %s2, %s242
        %s244 = sadd.s32 %s12, 4
        %s245 = smul.u32 8, %s244
      $region36: #{a_call__.3} parent=23 // pred_fallthru
        _
      // Predicated region
      $region37: #{a_call__.3} parent=23 // pred_check
        %p246 = pneg %p116
      $region38: #{a_call__.3} parent=23 // pred_check_branch
        %248 = sbr.rel (%p246) target = $region40
      $region39: #{a_call__.3} parent=23 // pred_region
        %s249 = sadd.s32 %s12, 6
        %s250 = smul.u32 8, %s249
        %p251 = scmp.lt.s32.totalorder %s250, 63
        %s252 = scalar_select %p251, %s250, 63
        %s253 = smul.addr %s252, 4
        %s254 = scalar_lea.vmem %s3, %s253
        %s255 = sadd.s32 %s12, 6
        %s256 = smul.u32 8, %s255
      $region40: #{a_call__.3} parent=23 // pred_fallthru
        _
    $region24: #{a_call__.3} parent=5 // pred_fallthru
      _
    %p257 = scmp.le.s32.totalorder 1, %s12
    %p258 = scmp.lt.s32.totalorder %s12, 3
    %p259 = pnand %p257, %p258
    %p260 = pneg %p259
    // Predicated region
    $region41: #{a_call__.3} parent=5 // pred_check
      _
    $region42: #{a_call__.3} parent=5 // pred_check_branch
      %262 = sbr.rel (%p259) target = $region44
    $region43: #{a_call__.3} parent=5 // pred_region
      %s263 = ssub.s32 %s12, 1
      %s264 = smul.u32 8, %s17
      %p265 = scmp.lt.s32.totalorder %s264, 63
      %s266 = scalar_select %p265, %s264, 63
      %s267 = smul.addr %s266, 4
      %s268 = scalar_lea.vmem %s0, %s267
      %p269 = pneg %p38
      %p270 = pneg %p35
      %s271 = sadd.s32 %s17, 2
      %s272 = smul.u32 8, %s271
      %p273 = scmp.lt.s32.totalorder %s272, 63
      %s274 = scalar_select %p273, %s272, 63
      %s275 = smul.addr %s274, 4
      %s276 = scalar_lea.vmem %s1, %s275
      %p277 = pneg %p66
      %p278 = pneg %p63
      %s279 = sadd.s32 %s17, 4
      %s280 = smul.u32 8, %s279
      %p281 = scmp.lt.s32.totalorder %s280, 63
      %s282 = scalar_select %p281, %s280, 63
      %s283 = smul.addr %s282, 4
      %s284 = scalar_lea.vmem %s2, %s283
      %p285 = pneg %p94
      %p286 = pneg %p91
      %s287 = sadd.s32 %s17, 6
      %s288 = smul.u32 8, %s287
      %p289 = scmp.lt.s32.totalorder %s288, 63
      %s290 = scalar_select %p289, %s288, 63
      %s291 = smul.addr %s290, 4
      %s292 = scalar_lea.vmem %s3, %s291
      %p293 = pneg %p122
      %p294 = pneg %p119
      %p295 = pneg %p143
      %p296 = pneg %p140
      %p297 = pneg %p164
      %p298 = pneg %p161
      %p299 = pneg %p190
      %p300 = pneg %p187
      %s301 = smul.u32 8, %s17
      %p302 = scmp.lt.s32.totalorder %s301, 15
      %s303 = scalar_select %p302, %s301, 15
      %s304 = smul.addr %s303, 8
      %s305 = scalar_lea.vmem %s6, %s304
      %s306 = smul.u32 8, %s17
      %p307 = scmp.lt.s32.totalorder %s306, 63
      %s308 = scalar_select %p307, %s306, 63
      %s309 = smul.addr %s308, 4
      %s310 = scalar_lea.vmem %s0, %s309
      %s311 = smul.u32 8, %s17
      %s312 = sadd.s32 %s17, 2
      %s313 = smul.u32 8, %s312
      %p314 = scmp.lt.s32.totalorder %s313, 63
      %s315 = scalar_select %p314, %s313, 63
      %s316 = smul.addr %s315, 4
      %s317 = scalar_lea.vmem %s1, %s316
      %s318 = sadd.s32 %s17, 2
      %s319 = smul.u32 8, %s318
      %s320 = sadd.s32 %s17, 4
      %s321 = smul.u32 8, %s320
      %p322 = scmp.lt.s32.totalorder %s321, 63
      %s323 = scalar_select %p322, %s321, 63
      %s324 = smul.addr %s323, 4
      %s325 = scalar_lea.vmem %s2, %s324
      %s326 = sadd.s32 %s17, 4
      %s327 = smul.u32 8, %s326
      %s328 = sadd.s32 %s17, 6
      %s329 = smul.u32 8, %s328
      %p330 = scmp.lt.s32.totalorder %s329, 63
      %s331 = scalar_select %p330, %s329, 63
      %s332 = smul.addr %s331, 4
      %s333 = scalar_lea.vmem %s3, %s332
      %s334 = sadd.s32 %s17, 6
      %s335 = smul.u32 8, %s334
      %s336 = smul.u32 8, %s17
      %p337 = scmp.lt.s32.totalorder %s336, 15
      %s338 = scalar_select %p337, %s336, 15
      %s339 = smul.addr %s338, 8
      %s340 = scalar_lea.vmem %s6, %s339
      %s341 = smul.u32 8, %s17
      %v342 = vld [vmem:[%s4] sm:$0x1]
      %v344 = vlaneseq
      %v345 = vshrl.u32 %v344, 7
      %v346 = vsub.s32 0, %v345
      %v347 = vrot.slane %v342, %v346
      %v349 = vld [vmem:[%s5] sm:$0x1]
      %v351 = vlaneseq
      %v352 = vshrl.u32 %v351, 7
      %v353 = vsub.s32 0, %v352
      %v354 = vrot.slane %v349, %v353
      %v356 = vld [vmem:[%s310] sm:$0xf]
      %v357 = vld [vmem:[%s310 + $0x4] sm:$0xf]
      %v358 = vld [vmem:[%s310 + $0x8] sm:$0xf]
      %v359 = vld [vmem:[%s310 + $0xc] sm:$0xf]
      %v360 = vld [vmem:[%s310 + $0x10] sm:$0xf]
      %v361 = vld [vmem:[%s310 + $0x14] sm:$0xf]
      %v362 = vld [vmem:[%s310 + $0x18] sm:$0xf]
      %v363 = vld [vmem:[%s310 + $0x1c] sm:$0xf]
      %v364 = vunpack.c.l.bf16 %v356
      %v365 = vunpack.c.l.bf16 %v357
      %v366 = vunpack.c.l.bf16 %v358
      %v367 = vunpack.c.l.bf16 %v359
      %v368 = vunpack.c.l.bf16 %v360
      %v369 = vunpack.c.l.bf16 %v361
      %v370 = vunpack.c.l.bf16 %v362
      %v371 = vunpack.c.l.bf16 %v363
      %v372 = vmul.f32 %v364, %v347
      %v373 = vmul.f32 %v365, %v347
      %v374 = vmul.f32 %v366, %v347
      %v375 = vmul.f32 %v367, %v347
      %v376 = vmul.f32 %v368, %v347
      %v377 = vmul.f32 %v369, %v347
      %v378 = vmul.f32 %v370, %v347
      %v379 = vmul.f32 %v371, %v347
      %v380 = vadd.f32 %v372, %v354
      %v381 = vadd.f32 %v373, %v354
      %v382 = vadd.f32 %v374, %v354
      %v383 = vadd.f32 %v375, %v354
      %v384 = vadd.f32 %v376, %v354
      %v385 = vadd.f32 %v377, %v354
      %v386 = vadd.f32 %v378, %v354
      %v387 = vadd.f32 %v379, %v354
      %v388 = vmax.f32 %v380, 0.0
      %v389 = vmax.f32 %v381, 0.0
      %v390 = vmax.f32 %v382, 0.0
      %v391 = vmax.f32 %v383, 0.0
      %v392 = vmax.f32 %v384, 0.0
      %v393 = vmax.f32 %v385, 0.0
      %v394 = vmax.f32 %v386, 0.0
      %v395 = vmax.f32 %v387, 0.0
      %v396 = vld [vmem:[%s317] sm:$0xf]
      %v397 = vld [vmem:[%s317 + $0x4] sm:$0xf]
      %v398 = vld [vmem:[%s317 + $0x8] sm:$0xf]
      %v399 = vld [vmem:[%s317 + $0xc] sm:$0xf]
      %v400 = vld [vmem:[%s317 + $0x10] sm:$0xf]
      %v401 = vld [vmem:[%s317 + $0x14] sm:$0xf]
      %v402 = vld [vmem:[%s317 + $0x18] sm:$0xf]
      %v403 = vld [vmem:[%s317 + $0x1c] sm:$0xf]
      %v404 = vunpack.c.l.bf16 %v396
      %v405 = vunpack.c.l.bf16 %v397
      %v406 = vunpack.c.l.bf16 %v398
      %v407 = vunpack.c.l.bf16 %v399
      %v408 = vunpack.c.l.bf16 %v400
      %v409 = vunpack.c.l.bf16 %v401
      %v410 = vunpack.c.l.bf16 %v402
      %v411 = vunpack.c.l.bf16 %v403
      %v412 = vmul.f32 %v404, %v347
      %v413 = vmul.f32 %v405, %v347
      %v414 = vmul.f32 %v406, %v347
      %v415 = vmul.f32 %v407, %v347
      %v416 = vmul.f32 %v408, %v347
      %v417 = vmul.f32 %v409, %v347
      %v418 = vmul.f32 %v410, %v347
      %v419 = vmul.f32 %v411, %v347
      %v420 = vadd.f32 %v412, %v354
      %v421 = vadd.f32 %v413, %v354
      %v422 = vadd.f32 %v414, %v354
      %v423 = vadd.f32 %v415, %v354
      %v424 = vadd.f32 %v416, %v354
      %v425 = vadd.f32 %v417, %v354
      %v426 = vadd.f32 %v418, %v354
      %v427 = vadd.f32 %v419, %v354
      %v428 = vmax.f32 %v420, 0.0
      %v429 = vmax.f32 %v421, 0.0
      %v430 = vmax.f32 %v422, 0.0
      %v431 = vmax.f32 %v423, 0.0
      %v432 = vmax.f32 %v424, 0.0
      %v433 = vmax.f32 %v425, 0.0
      %v434 = vmax.f32 %v426, 0.0
      %v435 = vmax.f32 %v427, 0.0
      %v436 = vmax.f32 %v388, %v428
      %v437 = vmax.f32 %v389, %v429
      %v438 = vmax.f32 %v390, %v430
      %v439 = vmax.f32 %v391, %v431
      %v440 = vmax.f32 %v392, %v432
      %v441 = vmax.f32 %v393, %v433
      %v442 = vmax.f32 %v394, %v434
      %v443 = vmax.f32 %v395, %v435
      %v444 = vld [vmem:[%s325] sm:$0xf]
      %v445 = vld [vmem:[%s325 + $0x4] sm:$0xf]
      %v446 = vld [vmem:[%s325 + $0x8] sm:$0xf]
      %v447 = vld [vmem:[%s325 + $0xc] sm:$0xf]
      %v448 = vld [vmem:[%s325 + $0x10] sm:$0xf]
      %v449 = vld [vmem:[%s325 + $0x14] sm:$0xf]
      %v450 = vld [vmem:[%s325 + $0x18] sm:$0xf]
      %v451 = vld [vmem:[%s325 + $0x1c] sm:$0xf]
      %v452 = vunpack.c.l.bf16 %v444
      %v453 = vunpack.c.l.bf16 %v445
      %v454 = vunpack.c.l.bf16 %v446
      %v455 = vunpack.c.l.bf16 %v447
      %v456 = vunpack.c.l.bf16 %v448
      %v457 = vunpack.c.l.bf16 %v449
      %v458 = vunpack.c.l.bf16 %v450
      %v459 = vunpack.c.l.bf16 %v451
      %v460 = vmul.f32 %v452, %v347
      %v461 = vmul.f32 %v453, %v347
      %v462 = vmul.f32 %v454, %v347
      %v463 = vmul.f32 %v455, %v347
      %v464 = vmul.f32 %v456, %v347
      %v465 = vmul.f32 %v457, %v347
      %v466 = vmul.f32 %v458, %v347
      %v467 = vmul.f32 %v459, %v347
      %v468 = vadd.f32 %v460, %v354
      %v469 = vadd.f32 %v461, %v354
      %v470 = vadd.f32 %v462, %v354
      %v471 = vadd.f32 %v463, %v354
      %v472 = vadd.f32 %v464, %v354
      %v473 = vadd.f32 %v465, %v354
      %v474 = vadd.f32 %v466, %v354
      %v475 = vadd.f32 %v467, %v354
      %v476 = vmax.f32 %v468, 0.0
      %v477 = vmax.f32 %v469, 0.0
      %v478 = vmax.f32 %v470, 0.0
      %v479 = vmax.f32 %v471, 0.0
      %v480 = vmax.f32 %v472, 0.0
      %v481 = vmax.f32 %v473, 0.0
      %v482 = vmax.f32 %v474, 0.0
      %v483 = vmax.f32 %v475, 0.0
      %v484 = vld [vmem:[%s333] sm:$0xf]
      %v485 = vld [vmem:[%s333 + $0x4] sm:$0xf]
      %v486 = vld [vmem:[%s333 + $0x8] sm:$0xf]
      %v487 = vld [vmem:[%s333 + $0xc] sm:$0xf]
      %v488 = vld [vmem:[%s333 + $0x10] sm:$0xf]
      %v489 = vld [vmem:[%s333 + $0x14] sm:$0xf]
      %v490 = vld [vmem:[%s333 + $0x18] sm:$0xf]
      %v491 = vld [vmem:[%s333 + $0x1c] sm:$0xf]
      %v492 = vunpack.c.l.bf16 %v484
      %v493 = vunpack.c.l.bf16 %v485
      %v494 = vunpack.c.l.bf16 %v486
      %v495 = vunpack.c.l.bf16 %v487
      %v496 = vunpack.c.l.bf16 %v488
      %v497 = vunpack.c.l.bf16 %v489
      %v498 = vunpack.c.l.bf16 %v490
      %v499 = vunpack.c.l.bf16 %v491
      %v500 = vmul.f32 %v492, %v347
      %v501 = vmul.f32 %v493, %v347
      %v502 = vmul.f32 %v494, %v347
      %v503 = vmul.f32 %v495, %v347
      %v504 = vmul.f32 %v496, %v347
      %v505 = vmul.f32 %v497, %v347
      %v506 = vmul.f32 %v498, %v347
      %v507 = vmul.f32 %v499, %v347
      %v508 = vadd.f32 %v500, %v354
      %v509 = vadd.f32 %v501, %v354
      %v510 = vadd.f32 %v502, %v354
      %v511 = vadd.f32 %v503, %v354
      %v512 = vadd.f32 %v504, %v354
      %v513 = vadd.f32 %v505, %v354
      %v514 = vadd.f32 %v506, %v354
      %v515 = vadd.f32 %v507, %v354
      %v516 = vmax.f32 %v508, 0.0
      %v517 = vmax.f32 %v509, 0.0
      %v518 = vmax.f32 %v510, 0.0
      %v519 = vmax.f32 %v511, 0.0
      %v520 = vmax.f32 %v512, 0.0
      %v521 = vmax.f32 %v513, 0.0
      %v522 = vmax.f32 %v514, 0.0
      %v523 = vmax.f32 %v515, 0.0
      %v524 = vmax.f32 %v476, %v516
      %v525 = vmax.f32 %v477, %v517
      %v526 = vmax.f32 %v478, %v518
      %v527 = vmax.f32 %v479, %v519
      %v528 = vmax.f32 %v480, %v520
      %v529 = vmax.f32 %v481, %v521
      %v530 = vmax.f32 %v482, %v522
      %v531 = vmax.f32 %v483, %v523
      %v532 = vmax.f32 %v436, %v524
      %v533 = vmax.f32 %v437, %v525
      %v534 = vmax.f32 %v438, %v526
      %v535 = vmax.f32 %v439, %v527
      %v536 = vmax.f32 %v440, %v528
      %v537 = vmax.f32 %v441, %v529
      %v538 = vmax.f32 %v442, %v530
      %v539 = vmax.f32 %v443, %v531
      %540 = vst [vmem:[%s340] sm:$0xff] %v532
      %541 = vst [vmem:[%s340 + $0x8] sm:$0xff] %v533
      %542 = vst [vmem:[%s340 + $0x10] sm:$0xff] %v534
      %543 = vst [vmem:[%s340 + $0x18] sm:$0xff] %v535
      %544 = vst [vmem:[%s340 + $0x20] sm:$0xff] %v536
      %545 = vst [vmem:[%s340 + $0x28] sm:$0xff] %v537
      %546 = vst [vmem:[%s340 + $0x30] sm:$0xff] %v538
      %547 = vst [vmem:[%s340 + $0x38] sm:$0xff] %v539
      %s548 = smul.u32 8, %s17
      %p549 = scmp.lt.s32.totalorder %s548, 15
      %s550 = scalar_select %p549, %s548, 15
      %s551 = smul.addr %s550, 8
      %s552 = scalar_lea.vmem %s6, %s551
      // Predicated region
      $region45: #{a_call__.3} parent=43 // pred_check
        %p553 = pneg %p187
      $region46: #{a_call__.3} parent=43 // pred_check_branch
        %555 = sbr.rel (%p553) target = $region48
      $region47: #{a_call__.3} parent=43 // pred_region
        %s556 = smul.u32 8, %s17
      $region48: #{a_call__.3} parent=43 // pred_fallthru
        _
    $region44: #{a_call__.3} parent=5 // pred_fallthru
      _
    %p557 = scmp.le.s32.totalorder 2, %s12
    // Predicated region
    $region49: #{a_call__.3} parent=5 // pred_check
      %p558 = pneg %p557
    $region50: #{a_call__.3} parent=5 // pred_check_branch
      %560 = sbr.rel (%p558) target = $region52
    $region51: #{a_call__.3} parent=5 // pred_region
      %s561 = ssub.s32 %s12, 2
      // Predicated region
      $region53: #{a_call__.3} parent=51 // pred_check
        %p562 = pneg %p193
      $region54: #{a_call__.3} parent=51 // pred_check_branch
        %564 = sbr.rel (%p562) target = $region56
      $region55: #{a_call__.3} parent=51 // pred_region
        %s565 = smul.u32 8, %s18
        %p566 = scmp.lt.s32.totalorder %s565, 15
        %s567 = scalar_select %p566, %s565, 15
        %s568 = smul.addr %s567, 8
        %s569 = scalar_lea.vmem %s6, %s568
      $region56: #{a_call__.3} parent=51 // pred_fallthru
        _
    $region52: #{a_call__.3} parent=5 // pred_fallthru
      _
  $region6: #{a_call__.3} parent=0 // loop_footer
    %s16 = sadd.s32 1, %s12
  $region7: #{a_call__.3} parent=0 // loop_footer_branch
    %11 = sbr.rel target = $region3
  $region8: #{a_call__.3} parent=0 // loop_exit
    _

</llo_original>
